<compile_context>
chip_gen: v6e
topology: v6e:2x2x1
jax: 0.10.0
libtpu: 0.0.40
codegen_flags: <defaults>
</compile_context>

<pallas_src>
import functools

import jax
import jax.numpy as jnp
from jax.experimental import pallas as pl
from jax.experimental.pallas import tpu as pltpu

HIDDEN = 768   # Swinv2 pooler_output width (fc in_features)
OUT = 512      # fc out_features


def _encoder_head_kernel(x_ref, w_ref, b_ref, o_ref, acc_ref, *, seq_len, seq_tile):
    # x_ref:   (TB, TL, H)  activation tile (f32 or bf16)
    # w_ref:   (H, OUT)     fc weight, pre-transposed, resident
    # b_ref:   (1, OUT)     fc bias, resident
    # o_ref:   (TB, OUT)    f32 output tile (written at last L-step only)
    # acc_ref: (TB, H)      f32 running sum over the sequence axis
    k = pl.program_id(1)

    @pl.when(k == 0)
    def _init():
        acc_ref[...] = jnp.zeros_like(acc_ref)

    x = x_ref[...]
    if seq_len % seq_tile != 0:
        # Last L-block is ragged: zero rows past the true sequence length so
        # stale VMEM never corrupts the running sum. Statically elided when the
        # sequence tile divides L (the common case).
        row = jax.lax.broadcasted_iota(jnp.int32, x.shape, dimension=1)
        x = jnp.where(row < (seq_len - k * seq_tile), x, jnp.zeros((), x.dtype))

    # Swinv2 pooler partial sum; accumulate in f32 without materializing an
    # upcast copy of the (possibly bf16) tile.
    acc_ref[...] += jnp.sum(x, axis=1, dtype=jnp.float32)

    @pl.when(k == pl.num_programs(1) - 1)
    def _finalize():
        pooled = acc_ref[...] * (1.0 / seq_len)          # mean over sequence, (TB, H)
        # fc: pooled @ W_t + b on the MXU, f32 accumulation.
        out = jnp.dot(pooled, w_ref[...], preferred_element_type=jnp.float32)
        o_ref[...] = out + b_ref[...]


def _vmem_budget():
    """(activation block target bytes, vmem_limit_bytes) per TPU generation."""
    cap = None
    try:
        cap = getattr(pltpu.get_tpu_info(), "vmem_capacity_bytes", None)
    except Exception:
        cap = None
    if cap is None:
        cap = 64 << 20                     # conservative: assume the smallest (v7x-class) VMEM
    if cap <= (64 << 20):                  # v7x: 64 MiB physical per TensorCore
        return 10 << 20, 48 << 20
    return 24 << 20, 100 << 20             # v5e / v6e: 128 MiB physical


def _pick_batch_tile(batch):
    if batch <= 8:
        return batch
    tb = max(8, min(256, (batch // 8) * 8))
    # Keep >= 4 batch blocks when possible so v7x's two TensorCores both get
    # work from the "parallel" batch axis (no-op on 1-TC v5e/v6e).
    while tb > 8 and pl.cdiv(batch, tb) < 4:
        tb = max(8, ((tb // 2) // 8) * 8)
    return tb


def _pick_seq_tile(seq, tb, itemsize, act_block_target):
    tl = act_block_target // (tb * HIDDEN * itemsize)
    tl = max(8, (tl // 8) * 8)
    return min(tl, seq)


@functools.partial(jax.jit, static_argnames=("seq_block",))
def transformer_encoder_head(last_hidden_state, fc_weight_t, fc_bias_2d, *, seq_block=None):
    """last_hidden_state: (B, L, 768) f32/bf16; fc_weight_t: (768, 512); fc_bias_2d: (1, 512)."""
    B, L, H = last_hidden_state.shape
    assert H == HIDDEN
    assert fc_weight_t.shape == (HIDDEN, OUT) and fc_bias_2d.shape == (1, OUT)

    x_itemsize = jnp.dtype(last_hidden_state.dtype).itemsize
    w_itemsize = jnp.dtype(fc_weight_t.dtype).itemsize

    act_block_target, vmem_limit = _vmem_budget()
    tb = _pick_batch_tile(B)
    tl = min(L, seq_block) if seq_block is not None else _pick_seq_tile(L, tb, x_itemsize, act_block_target)

    grid = (pl.cdiv(B, tb), pl.cdiv(L, tl))

    # Double-buffered activation/output blocks + resident weight/bias + accumulator.
    need = (2 * tb * tl * HIDDEN * x_itemsize
            + 2 * tb * OUT * 4
            + 2 * (HIDDEN * OUT * w_itemsize + OUT * 4)
            + tb * HIDDEN * 4)
    vmem_limit = max(vmem_limit, need + (2 << 20))

    cost = pl.CostEstimate(
        flops=2 * B * HIDDEN * OUT + B * L * HIDDEN,
        transcendentals=0,
        bytes_accessed=(B * L * HIDDEN * x_itemsize
                        + HIDDEN * OUT * w_itemsize
                        + OUT * 4
                        + B * OUT * 4),
    )

    kernel = functools.partial(_encoder_head_kernel, seq_len=L, seq_tile=tl)

    return pl.pallas_call(
        kernel,
        out_shape=jax.ShapeDtypeStruct((B, OUT), jnp.float32),
        grid=grid,
        in_specs=[
            pl.BlockSpec((tb, tl, HIDDEN), lambda i, k: (i, k, 0)),
            pl.BlockSpec((HIDDEN, OUT), lambda i, k: (0, 0)),
            pl.BlockSpec((1, OUT), lambda i, k: (0, 0)),
        ],
        out_specs=pl.BlockSpec((tb, OUT), lambda i, k: (i, 0)),
        scratch_shapes=[pltpu.VMEM((tb, HIDDEN), jnp.float32)],
        compiler_params=pltpu.CompilerParams(
            dimension_semantics=("parallel", "arbitrary"),
            vmem_limit_bytes=vmem_limit,
        ),
        cost_estimate=cost,
    )(last_hidden_state, fc_weight_t, fc_bias_2d)


def _reference(last_hidden_state, fc_weight, fc_bias):
    pooled = jnp.mean(last_hidden_state.astype(jnp.float32), axis=1)
    return pooled @ fc_weight.T + fc_bias


if __name__ == "__main__":
    key = jax.random.PRNGKey(0)
    k_x, k_w, k_b = jax.random.split(key, 3)

    B, L = 2, 8  # small batch / sequence; hidden must stay 768 (Linear(768, 512))

    # Stand-in for the Swinv2 backbone's last_hidden_state.
    x_f32 = jax.random.normal(k_x, (B, L, HIDDEN), dtype=jnp.float32)

    # fc parameters in PyTorch nn.Linear layout: weight [512, 768], bias [512].
    fc_weight = jax.random.normal(k_w, (OUT, HIDDEN), dtype=jnp.float32) * 0.02
    fc_bias = jax.random.normal(k_b, (OUT,), dtype=jnp.float32) * 0.02

    # Parameter-load-time layout prep (hoisted out of the per-call path).
    fc_weight_t = jnp.transpose(fc_weight)          # (768, 512)
    fc_bias_2d = fc_bias.reshape(1, OUT)            # (1, 512)

    # f32 activations.
    out = jax.block_until_ready(transformer_encoder_head(x_f32, fc_weight_t, fc_bias_2d))
    ref = _reference(x_f32, fc_weight, fc_bias)
    assert out.shape == (B, OUT)
    assert jnp.allclose(out, ref, atol=1e-4, rtol=1e-4), "f32 mismatch vs reference"

    # bf16 activations (half the HBM traffic; in-kernel accumulation stays f32).
    x_bf16 = x_f32.astype(jnp.bfloat16)
    out_bf16 = jax.block_until_ready(transformer_encoder_head(x_bf16, fc_weight_t, fc_bias_2d))
    ref_bf16 = _reference(x_bf16, fc_weight, fc_bias)
    assert jnp.allclose(out_bf16, ref_bf16, atol=1e-3, rtol=1e-3), "bf16 mismatch vs reference"

    # Ragged batch (B % tb != 0) with no host-side padding.
    x2 = jax.random.normal(jax.random.PRNGKey(1), (10, 24, HIDDEN), dtype=jnp.float32)
    out2 = jax.block_until_ready(transformer_encoder_head(x2, fc_weight_t, fc_bias_2d))
    ref2 = _reference(x2, fc_weight, fc_bias)
    assert out2.shape == (10, OUT)
    assert jnp.allclose(out2, ref2, atol=1e-3, rtol=1e-3), "ragged-batch mismatch vs reference"

    # Multi-step sequence reduction with a ragged last L-block (exercises the
    # accumulator init/finalize and in-kernel mask paths).
    x3 = jax.random.normal(jax.random.PRNGKey(2), (2, 20, HIDDEN), dtype=jnp.float32)
    out3 = jax.block_until_ready(transformer_encoder_head(x3, fc_weight_t, fc_bias_2d, seq_block=8))
    ref3 = _reference(x3, fc_weight, fc_bias)
    assert jnp.allclose(out3, ref3, atol=1e-3, rtol=1e-3), "seq-tiled mismatch vs reference"

    print("KERNEL_OK")
</pallas_src>

<mosaic_0001>
module attributes {stable_mosaic.version = 11 : i64} {
  func.func @_encoder_head_kernel(%arg0: i32, %arg1: i32, %arg2: memref<2x8x768xf32, #tpu.memory_space<vmem>>, %arg3: memref<768x512xf32, #tpu.memory_space<vmem>>, %arg4: memref<1x512xf32, #tpu.memory_space<vmem>>, %arg5: memref<2x512xf32, #tpu.memory_space<vmem>>, %arg6: memref<2x768xf32, #tpu.memory_space<vmem>>) attributes {dimension_semantics = [#tpu.dimension_semantics<parallel>, #tpu.dimension_semantics<arbitrary>], iteration_bounds = array<i64: 1, 1>, scalar_prefetch = 0 : i64, scratch_operands = 1 : i64, tpu.core_type = #tpu.core_type<tc>, window_params = [{transform_indices = @transform_0, window_bounds = array<i64: 2, 8, 768>}, {pipeline_mode = #tpu.pipeline_mode<synchronous>, transform_indices = @transform_1, window_bounds = array<i64: 768, 512>}, {pipeline_mode = #tpu.pipeline_mode<synchronous>, transform_indices = @transform_2, window_bounds = array<i64: 1, 512>}, {transform_indices = @transform_3, window_bounds = array<i64: 2, 512>}]} {
    %c0_i32 = arith.constant 0 : i32
    %0 = arith.cmpi eq, %arg1, %c0_i32 : i32
    %1 = arith.extui %0 : i1 to i32
    %c0_i32_0 = arith.constant 0 : i32
    %2 = arith.cmpi ne, %1, %c0_i32_0 : i32
    scf.if %2 {
      %cst_9 = arith.constant 0.000000e+00 : f32
      %11 = vector.broadcast %cst_9 : f32 to vector<2x768xf32>
      %c0_10 = arith.constant 0 : index
      %c0_11 = arith.constant 0 : index
      %12 = vector.load %arg6[%c0_10, %c0_11] : memref<2x768xf32, #tpu.memory_space<vmem>>, vector<2x768xf32>
      tpu.vector_store %arg6[%c0_10, %c0_11], %11 {strides = array<i32>} : memref<2x768xf32, #tpu.memory_space<vmem>>, vector<2x768xf32>,
    } else {
    }
    %c0 = arith.constant 0 : index
    %c0_1 = arith.constant 0 : index
    %c0_2 = arith.constant 0 : index
    %3 = vector.load %arg2[%c0, %c0_1, %c0_2] : memref<2x8x768xf32, #tpu.memory_space<vmem>>, vector<2x8x768xf32>
    %c0_3 = arith.constant 0 : index
    %c0_4 = arith.constant 0 : index
    %4 = vector.load %arg6[%c0_3, %c0_4] : memref<2x768xf32, #tpu.memory_space<vmem>>, vector<2x768xf32>
    %cst = arith.constant dense<0.000000e+00> : vector<2x768xf32>
    %5 = vector.multi_reduction <add>, %3, %cst [1] : vector<2x8x768xf32> to vector<2x768xf32>
    %6 = arith.addf %4, %5 : vector<2x768xf32>
    %c0_5 = arith.constant 0 : index
    %c0_6 = arith.constant 0 : index
    %7 = vector.load %arg6[%c0_5, %c0_6] : memref<2x768xf32, #tpu.memory_space<vmem>>, vector<2x768xf32>
    tpu.vector_store %arg6[%c0_5, %c0_6], %6 {strides = array<i32>} : memref<2x768xf32, #tpu.memory_space<vmem>>, vector<2x768xf32>,
    %c0_i32_7 = arith.constant 0 : i32
    %8 = arith.cmpi eq, %arg1, %c0_i32_7 : i32
    %9 = arith.extui %8 : i1 to i32
    %c0_i32_8 = arith.constant 0 : i32
    %10 = arith.cmpi ne, %9, %c0_i32_8 : i32
    scf.if %10 {
      %c0_9 = arith.constant 0 : index
      %c0_10 = arith.constant 0 : index
      %11 = vector.load %arg6[%c0_9, %c0_10] : memref<2x768xf32, #tpu.memory_space<vmem>>, vector<2x768xf32>
      %cst_11 = arith.constant 1.250000e-01 : f32
      %12 = vector.broadcast %cst_11 : f32 to vector<2x768xf32>
      %13 = arith.mulf %11, %12 : vector<2x768xf32>
      %c0_12 = arith.constant 0 : index
      %c0_13 = arith.constant 0 : index
      %14 = vector.load %arg3[%c0_12, %c0_13] : memref<768x512xf32, #tpu.memory_space<vmem>>, vector<768x512xf32>
      %cst_14 = arith.constant dense<0.000000e+00> : vector<2x512xf32>
      %15 = tpu.matmul %13, %14, %cst_14 {dimension_numbers = #tpu.dot_dimension_numbers<[1], [0], [0], [1], [0, 0, 1, 1], [], []>} : vector<2x768xf32>, vector<768x512xf32>, vector<2x512xf32> -> vector<2x512xf32>
      %c0_15 = arith.constant 0 : index
      %c0_16 = arith.constant 0 : index
      %16 = vector.load %arg4[%c0_15, %c0_16] : memref<1x512xf32, #tpu.memory_space<vmem>>, vector<1x512xf32>
      %17 = vector.broadcast %16 : vector<1x512xf32> to vector<2x512xf32>
      %18 = arith.addf %15, %17 : vector<2x512xf32>
      %c0_17 = arith.constant 0 : index
      %c0_18 = arith.constant 0 : index
      %19 = vector.load %arg5[%c0_17, %c0_18] : memref<2x512xf32, #tpu.memory_space<vmem>>, vector<2x512xf32>
      tpu.vector_store %arg5[%c0_17, %c0_18], %18 {strides = array<i32>} : memref<2x512xf32, #tpu.memory_space<vmem>>, vector<2x512xf32>,
    } else {
    }
    return
  }
  func.func @transform_0(%arg0: i32, %arg1: i32) -> (i32, i32, i32) {
    %c0_i32 = arith.constant 0 : i32
    %c0_i32_0 = arith.constant 0 : i32
    return %arg0, %arg1, %c0_i32 : i32, i32, i32
  }
  func.func @transform_1(%arg0: i32, %arg1: i32) -> (i32, i32) {
    %c0_i32 = arith.constant 0 : i32
    %c0_i32_0 = arith.constant 0 : i32
    %c0_i32_1 = arith.constant 0 : i32
    return %c0_i32, %c0_i32_0 : i32, i32
  }
  func.func @transform_2(%arg0: i32, %arg1: i32) -> (i32, i32) {
    %c0_i32 = arith.constant 0 : i32
    %c0_i32_0 = arith.constant 0 : i32
    %c0_i32_1 = arith.constant 0 : i32
    return %c0_i32, %c0_i32_0 : i32, i32
  }
  func.func @transform_3(%arg0: i32, %arg1: i32) -> (i32, i32) {
    %c0_i32 = arith.constant 0 : i32
    %c0_i32_0 = arith.constant 0 : i32
    return %arg0, %c0_i32 : i32, i32
  }
}

</mosaic_0001>

<llo_original>
// kernel: transformer_encoder_head.1
$region0: #{transformer_encoder_head.1}
  #allocation0 [shape = 'u32[]', space=smem, size = 0x4, offset = 0x4, fixed_abs, tag = 'smem constant byte address 0x4 - core index']
  #allocation1 [shape = 'u32[144,128]{1,0:T(1,128)}', space=vmem, size = 0x12000, scoped, tag = 'internal scratch']
  #allocation2 [shape = 'f32[2,768]{1,0:T(2,128)}', space=vmem, size = 0x1800, scoped, tag = 'scratch operand']
  %s0 = inlined_call_operand.hbm [shape: f32[2,8,768], index: 0, kind: input, shape index: {}]
  %s1 = inlined_call_operand.hbm [shape: f32[768,512], index: 1, kind: input, shape index: {}]
  %s2 = inlined_call_operand.hbm [shape: f32[1,512], index: 2, kind: input, shape index: {}]
  %s3 = inlined_call_operand.hbm [shape: f32[2,512], index: 3, kind: output, shape index: {}]
  %s4 = sld [smem:[#allocation0]]
  $region42: #{transformer_encoder_head.1} parent=0
    _
  %s6 = ssub.s32 1, %s4
  %s7 = scalar_select 0, %s6, %s4
  $region1: #{transformer_encoder_head.1} parent=0
    #allocation3 [shape = 'u8[49152]{0}', space=vmem, size = 0xc000, scoped, tag = 'input window, operand 0, single buffered']
    #allocation4 [shape = 's32[1]{0}', space=sflag, size = 0x4, scoped, tag = 'scoped memory for transformer_encoder_head.1']
    #allocation5 [shape = 's32[1]{0}', space=sflag, size = 0x4, scoped, tag = 'scoped memory for transformer_encoder_head.1']
    #allocation6 [shape = 'u8[1572864]{0}', space=vmem, size = 0x180000, scoped, tag = 'input window, operand 1, single buffered']
    #allocation7 [shape = 's32[1]{0}', space=sflag, size = 0x4, scoped, tag = 'scoped memory for transformer_encoder_head.1']
    #allocation8 [shape = 'u8[2048]{0}', space=vmem, size = 0x800, scoped, tag = 'input window, operand 2, single buffered']
    #allocation9 [shape = 'u8[4096]{0}', space=vmem, size = 0x1000, scoped, tag = 'output window, operand 0, single buffered']
    %8 = vsyncpa [#allocation4], 0
    %9 = vsyncpa [#allocation7], 0
    %10 = vsyncpa [#allocation5], 0
    // Predicated region
    $region2: #{transformer_encoder_head.1} parent=1 // pred_check
      _
    $region3: #{transformer_encoder_head.1} parent=1 // pred_check_branch
      %12 = sbr.rel (0) target = $region5
    $region4: #{transformer_encoder_head.1} parent=1 // pred_region
      %s14 = ssub.s32 1536, 1536
      %15 = vsyncadd [#allocation4], %s14
      %s16 = sshll.u32 [#allocation3], 4
      %s17 = int_to_ptr.vmem [resolvable:$true] %s16
      %22 = dma.hbm_to_vmem [thread:$0]  %s0, 1536, %s17, [#allocation4], 768, 768, 48
    $region5: #{transformer_encoder_head.1} parent=1 // pred_fallthru
      _
    // Predicated region
    $region6: #{transformer_encoder_head.1} parent=1 // pred_check
      _
    $region7: #{transformer_encoder_head.1} parent=1 // pred_check_branch
      %24 = sbr.rel (0) target = $region9
    $region8: #{transformer_encoder_head.1} parent=1 // pred_region
      %s26 = ssub.s32 49152, 49152
      %27 = vsyncadd [#allocation7], %s26
      %s28 = sshll.u32 [#allocation6], 4
      %s29 = int_to_ptr.vmem [resolvable:$true] %s28
      %34 = dma.hbm_to_vmem [thread:$0]  %s1, 49152, %s29, [#allocation7], 512, 512, 32
    $region9: #{transformer_encoder_head.1} parent=1 // pred_fallthru
      _
    // Predicated region
    $region10: #{transformer_encoder_head.1} parent=1 // pred_check
      _
    $region11: #{transformer_encoder_head.1} parent=1 // pred_check_branch
      %36 = sbr.rel (0) target = $region13
    $region12: #{transformer_encoder_head.1} parent=1 // pred_region
      %s38 = ssub.s32 64, 64
      %39 = vsyncadd [#allocation7], %s38
      %s41 = sshll.u32 [#allocation8], 4
      %s42 = int_to_ptr.vmem [resolvable:$true] %s41
      %44 = dma.hbm_to_vmem [thread:$0]  %s2, 64, %s42, [#allocation7]
    $region13: #{transformer_encoder_head.1} parent=1 // pred_fallthru
      _
    // Predicated region
    $region14: #{transformer_encoder_head.1} parent=1 // pred_check
      _
    $region15: #{transformer_encoder_head.1} parent=1 // pred_check_branch
      %46 = sbr.rel (0) target = $region17
    $region16: #{transformer_encoder_head.1} parent=1 // pred_region
      %47 = dma.done [#allocation4], 1536
    $region17: #{transformer_encoder_head.1} parent=1 // pred_fallthru
      _
    // Predicated region
    $region18: #{transformer_encoder_head.1} parent=1 // pred_check
      _
    $region19: #{transformer_encoder_head.1} parent=1 // pred_check_branch
      %49 = sbr.rel (0) target = $region21
    $region20: #{transformer_encoder_head.1} parent=1 // pred_region
      %50 = dma.done [#allocation7], 49152
    $region21: #{transformer_encoder_head.1} parent=1 // pred_fallthru
      _
    // Predicated region
    $region22: #{transformer_encoder_head.1} parent=1 // pred_check
      _
    $region23: #{transformer_encoder_head.1} parent=1 // pred_check_branch
      %52 = sbr.rel (0) target = $region25
    $region24: #{transformer_encoder_head.1} parent=1 // pred_region
      %53 = dma.done [#allocation7], 64
    $region25: #{transformer_encoder_head.1} parent=1 // pred_fallthru
      _
    %p54 = scmp.eq.s32.totalorder 0, 0
    // Predicated region
    $region26: #{transformer_encoder_head.1} parent=1 // pred_check
      %p55 = pneg %p54
    $region27: #{transformer_encoder_head.1} parent=1 // pred_check_branch
      %57 = sbr.rel (%p55) target = $region29
    $region28: #{transformer_encoder_head.1} parent=1 // pred_region
      %58 = vst [vmem:[#allocation2] sm:$0xff] 0.0
      %59 = vst [vmem:[#allocation2 + $0x8] sm:$0xf] 0.0
    $region29: #{transformer_encoder_head.1} parent=1 // pred_fallthru
      _
    %v60 = vld [vmem:[#allocation3] sm:$0xff]
    %v61 = vld [vmem:[#allocation3 + $0x8] sm:$0xff]
    %v62 = vld [vmem:[#allocation3 + $0x10] sm:$0xff]
    %v63 = vld [vmem:[#allocation3 + $0x18] sm:$0xff]
    %v64 = vld [vmem:[#allocation3 + $0x20] sm:$0xff]
    %v65 = vld [vmem:[#allocation3 + $0x28] sm:$0xff]
    %v66 = vld [vmem:[#allocation3 + $0x30] sm:$0xff]
    %v67 = vld [vmem:[#allocation3 + $0x38] sm:$0xff]
    %v68 = vld [vmem:[#allocation3 + $0x40] sm:$0xff]
    %v69 = vld [vmem:[#allocation3 + $0x48] sm:$0xff]
    %v70 = vld [vmem:[#allocation3 + $0x50] sm:$0xff]
    %v71 = vld [vmem:[#allocation3 + $0x58] sm:$0xff]
    %v72 = vld [vmem:[#allocation2] sm:$0xff]
    %v73 = vld [vmem:[#allocation2 + $0x8] sm:$0xf]
    %v74 = vrot.slane %v60, 4
    %v75 = vadd.f32 %v60, %v74
    %v76 = vrot.slane %v75, 2
    %v77 = vadd.f32 %v75, %v76
    %v78 = vrot.slane %v77, 1
    %v79 = vadd.f32 %v77, %v78
    %v80 = vrot.slane %v61, 4
    %v81 = vadd.f32 %v61, %v80
    %v82 = vrot.slane %v81, 2
    %v83 = vadd.f32 %v81, %v82
    %v84 = vrot.slane %v83, 1
    %v85 = vadd.f32 %v83, %v84
    %v86 = vrot.slane %v62, 4
    %v87 = vadd.f32 %v62, %v86
    %v88 = vrot.slane %v87, 2
    %v89 = vadd.f32 %v87, %v88
    %v90 = vrot.slane %v89, 1
    %v91 = vadd.f32 %v89, %v90
    %v92 = vrot.slane %v63, 4
    %v93 = vadd.f32 %v63, %v92
    %v94 = vrot.slane %v93, 2
    %v95 = vadd.f32 %v93, %v94
    %v96 = vrot.slane %v95, 1
    %v97 = vadd.f32 %v95, %v96
    %v98 = vrot.slane %v64, 4
    %v99 = vadd.f32 %v64, %v98
    %v100 = vrot.slane %v99, 2
    %v101 = vadd.f32 %v99, %v100
    %v102 = vrot.slane %v101, 1
    %v103 = vadd.f32 %v101, %v102
    %v104 = vrot.slane %v65, 4
    %v105 = vadd.f32 %v65, %v104
    %v106 = vrot.slane %v105, 2
    %v107 = vadd.f32 %v105, %v106
    %v108 = vrot.slane %v107, 1
    %v109 = vadd.f32 %v107, %v108
    %v110 = vrot.slane %v66, 4
    %v111 = vadd.f32 %v66, %v110
    %v112 = vrot.slane %v111, 2
    %v113 = vadd.f32 %v111, %v112
    %v114 = vrot.slane %v113, 1
    %v115 = vadd.f32 %v113, %v114
    %v116 = vrot.slane %v67, 4
    %v117 = vadd.f32 %v67, %v116
    %v118 = vrot.slane %v117, 2
    %v119 = vadd.f32 %v117, %v118
    %v120 = vrot.slane %v119, 1
    %v121 = vadd.f32 %v119, %v120
    %v122 = vrot.slane %v68, 4
    %v123 = vadd.f32 %v68, %v122
    %v124 = vrot.slane %v123, 2
    %v125 = vadd.f32 %v123, %v124
    %v126 = vrot.slane %v125, 1
    %v127 = vadd.f32 %v125, %v126
    %v128 = vrot.slane %v69, 4
    %v129 = vadd.f32 %v69, %v128
    %v130 = vrot.slane %v129, 2
    %v131 = vadd.f32 %v129, %v130
    %v132 = vrot.slane %v131, 1
    %v133 = vadd.f32 %v131, %v132
    %v134 = vrot.slane %v70, 4
    %v135 = vadd.f32 %v70, %v134
    %v136 = vrot.slane %v135, 2
    %v137 = vadd.f32 %v135, %v136
    %v138 = vrot.slane %v137, 1
    %v139 = vadd.f32 %v137, %v138
    %v140 = vrot.slane %v71, 4
    %v141 = vadd.f32 %v71, %v140
    %v142 = vrot.slane %v141, 2
    %v143 = vadd.f32 %v141, %v142
    %v144 = vrot.slane %v143, 1
    %v145 = vadd.f32 %v143, %v144
    %v158 = vcombine.low %v79, %v85
    %v159 = vcombine.low %v91, %v97
    %v161 = vunpack.c.l.s4 1983009808
    %v162 = vunpack.c.0.s8 %v161
    %v163 = vlaneseq
    %v164 = vshrl.u32 %v163, 7
    %v165 = vsub.s32 %v162, %v164
    %v166 = vrot.slane %v158, %v165
    %v168 = vunpack.c.l.s4 1983009808
    %v169 = vunpack.c.0.s8 %v168
    %v170 = vlaneseq
    %v171 = vshrl.u32 %v170, 7
    %v172 = vsub.s32 %v169, %v171
    %v173 = vrot.slane %v159, %v172
    %v174 = vcombine.low %v166, %v173
    %v175 = vcombine.low %v103, %v109
    %v177 = vunpack.c.l.s4 1983009808
    %v178 = vunpack.c.0.s8 %v177
    %v179 = vlaneseq
    %v180 = vshrl.u32 %v179, 7
    %v181 = vsub.s32 %v178, %v180
    %v182 = vrot.slane %v175, %v181
    %v183 = vcombine.low %v115, %v121
    %v184 = vcombine.low %v127, %v133
    %v186 = vunpack.c.l.s4 1983009808
    %v187 = vunpack.c.0.s8 %v186
    %v188 = vlaneseq
    %v189 = vshrl.u32 %v188, 7
    %v190 = vsub.s32 %v187, %v189
    %v191 = vrot.slane %v183, %v190
    %v193 = vunpack.c.l.s4 1983009808
    %v194 = vunpack.c.0.s8 %v193
    %v195 = vlaneseq
    %v196 = vshrl.u32 %v195, 7
    %v197 = vsub.s32 %v194, %v196
    %v198 = vrot.slane %v184, %v197
    %v199 = vcombine.low %v191, %v198
    %v200 = vcombine.low %v139, %v145
    %v202 = vunpack.c.l.s4 1983009808
    %v203 = vunpack.c.0.s8 %v202
    %v204 = vlaneseq
    %v205 = vshrl.u32 %v204, 7
    %v206 = vsub.s32 %v203, %v205
    %v207 = vrot.slane %v200, %v206
    %vm208 = vcmask 1044484
    %v209 = vsel %vm208, %v174, %v174
    %vm210 = vcmask 1046534
    %v211 = vsel %vm210, %v174, %v209
    %v212 = vrot.slane %v199, 7
    %vm213 = vcmask 1041409
    %v214 = vsel %vm213, %v212, %v211
    %vm215 = vcmask 1043459
    %v216 = vsel %vm215, %v212, %v214
    %vm217 = vcmask 1045509
    %v218 = vsel %vm217, %v212, %v216
    %vm219 = vcmask 1047559
    %v220 = vsel %vm219, %v212, %v218
    %v221 = vsel %vm208, %v182, %v182
    %v222 = vsel %vm210, %v182, %v221
    %v223 = vrot.slane %v207, 7
    %v224 = vsel %vm213, %v223, %v222
    %v225 = vsel %vm215, %v223, %v224
    %v226 = vsel %vm217, %v223, %v225
    %v227 = vsel %vm219, %v223, %v226
    %v230 = vadd.f32 %v72, %v220
    %v231 = vadd.f32 %v73, %v227
    %232 = vst [vmem:[#allocation2] sm:$0xff] %v230
    %233 = vst [vmem:[#allocation2 + $0x8] sm:$0xf] %v231
    // Predicated region
    $region30: #{transformer_encoder_head.1} parent=1 // pred_check
      %p234 = pneg %p54
    $region31: #{transformer_encoder_head.1} parent=1 // pred_check_branch
      %236 = sbr.rel (%p234) target = $region33
    $region32: #{transformer_encoder_head.1} parent=1 // pred_region
      %v237 = vld [vmem:[#allocation2] sm:$0xff]
      %v238 = vld [vmem:[#allocation2 + $0x8] sm:$0xf]
      %v239 = vmul.f32 %v237, 0.125
      %v240 = vmul.f32 %v238, 0.125
      %v241 = vld [vmem:[#allocation6] sm:$0xff]
      %v242 = vld [vmem:[#allocation6 + $0x8] sm:$0xff]
      %v243 = vld [vmem:[#allocation6 + $0x10] sm:$0xff]
      %v244 = vld [vmem:[#allocation6 + $0x18] sm:$0xff]
      %v245 = vld [vmem:[#allocation6 + $0x20] sm:$0xff]
      %v246 = vld [vmem:[#allocation6 + $0x28] sm:$0xff]
      %v247 = vld [vmem:[#allocation6 + $0x30] sm:$0xff]
      %v248 = vld [vmem:[#allocation6 + $0x38] sm:$0xff]
      %v249 = vld [vmem:[#allocation6 + $0x40] sm:$0xff]
      %v250 = vld [vmem:[#allocation6 + $0x48] sm:$0xff]
      %v251 = vld [vmem:[#allocation6 + $0x50] sm:$0xff]
      %v252 = vld [vmem:[#allocation6 + $0x58] sm:$0xff]
      %v253 = vld [vmem:[#allocation6 + $0x60] sm:$0xff]
      %v254 = vld [vmem:[#allocation6 + $0x68] sm:$0xff]
      %v255 = vld [vmem:[#allocation6 + $0x70] sm:$0xff]
      %v256 = vld [vmem:[#allocation6 + $0x78] sm:$0xff]
      %v257 = vld [vmem:[#allocation6 + $0x80] sm:$0xff]
      %v258 = vld [vmem:[#allocation6 + $0x88] sm:$0xff]
      %v259 = vld [vmem:[#allocation6 + $0x90] sm:$0xff]
      %v260 = vld [vmem:[#allocation6 + $0x98] sm:$0xff]
      %v261 = vld [vmem:[#allocation6 + $0xa0] sm:$0xff]
      %v262 = vld [vmem:[#allocation6 + $0xa8] sm:$0xff]
      %v263 = vld [vmem:[#allocation6 + $0xb0] sm:$0xff]
      %v264 = vld [vmem:[#allocation6 + $0xb8] sm:$0xff]
      %v265 = vld [vmem:[#allocation6 + $0xc0] sm:$0xff]
      %v266 = vld [vmem:[#allocation6 + $0xc8] sm:$0xff]
      %v267 = vld [vmem:[#allocation6 + $0xd0] sm:$0xff]
      %v268 = vld [vmem:[#allocation6 + $0xd8] sm:$0xff]
      %v269 = vld [vmem:[#allocation6 + $0xe0] sm:$0xff]
      %v270 = vld [vmem:[#allocation6 + $0xe8] sm:$0xff]
      %v271 = vld [vmem:[#allocation6 + $0xf0] sm:$0xff]
      %v272 = vld [vmem:[#allocation6 + $0xf8] sm:$0xff]
      %v273 = vld [vmem:[#allocation6 + $0x100] sm:$0xff]
      %v274 = vld [vmem:[#allocation6 + $0x108] sm:$0xff]
      %v275 = vld [vmem:[#allocation6 + $0x110] sm:$0xff]
      %v276 = vld [vmem:[#allocation6 + $0x118] sm:$0xff]
      %v277 = vld [vmem:[#allocation6 + $0x120] sm:$0xff]
      %v278 = vld [vmem:[#allocation6 + $0x128] sm:$0xff]
      %v279 = vld [vmem:[#allocation6 + $0x130] sm:$0xff]
      %v280 = vld [vmem:[#allocation6 + $0x138] sm:$0xff]
      %v281 = vld [vmem:[#allocation6 + $0x140] sm:$0xff]
      %v282 = vld [vmem:[#allocation6 + $0x148] sm:$0xff]
      %v283 = vld [vmem:[#allocation6 + $0x150] sm:$0xff]
      %v284 = vld [vmem:[#allocation6 + $0x158] sm:$0xff]
      %v285 = vld [vmem:[#allocation6 + $0x160] sm:$0xff]
      %v286 = vld [vmem:[#allocation6 + $0x168] sm:$0xff]
      %v287 = vld [vmem:[#allocation6 + $0x170] sm:$0xff]
      %v288 = vld [vmem:[#allocation6 + $0x178] sm:$0xff]
      %v289 = vld [vmem:[#allocation6 + $0x180] sm:$0xff]
      %v290 = vld [vmem:[#allocation6 + $0x188] sm:$0xff]
      %v291 = vld [vmem:[#allocation6 + $0x190] sm:$0xff]
      %v292 = vld [vmem:[#allocation6 + $0x198] sm:$0xff]
      %v293 = vld [vmem:[#allocation6 + $0x1a0] sm:$0xff]
      %v294 = vld [vmem:[#allocation6 + $0x1a8] sm:$0xff]
      %v295 = vld [vmem:[#allocation6 + $0x1b0] sm:$0xff]
      %v296 = vld [vmem:[#allocation6 + $0x1b8] sm:$0xff]
      %v297 = vld [vmem:[#allocation6 + $0x1c0] sm:$0xff]
      %v298 = vld [vmem:[#allocation6 + $0x1c8] sm:$0xff]
      %v299 = vld [vmem:[#allocation6 + $0x1d0] sm:$0xff]
      %v300 = vld [vmem:[#allocation6 + $0x1d8] sm:$0xff]
      %v301 = vld [vmem:[#allocation6 + $0x1e0] sm:$0xff]
      %v302 = vld [vmem:[#allocation6 + $0x1e8] sm:$0xff]
      %v303 = vld [vmem:[#allocation6 + $0x1f0] sm:$0xff]
      %v304 = vld [vmem:[#allocation6 + $0x1f8] sm:$0xff]
      %v305 = vld [vmem:[#allocation6 + $0x200] sm:$0xff]
      %v306 = vld [vmem:[#allocation6 + $0x208] sm:$0xff]
      %v307 = vld [vmem:[#allocation6 + $0x210] sm:$0xff]
      %v308 = vld [vmem:[#allocation6 + $0x218] sm:$0xff]
      %v309 = vld [vmem:[#allocation6 + $0x220] sm:$0xff]
      %v310 = vld [vmem:[#allocation6 + $0x228] sm:$0xff]
      %v311 = vld [vmem:[#allocation6 + $0x230] sm:$0xff]
      %v312 = vld [vmem:[#allocation6 + $0x238] sm:$0xff]
      %v313 = vld [vmem:[#allocation6 + $0x240] sm:$0xff]
      %v314 = vld [vmem:[#allocation6 + $0x248] sm:$0xff]
      %v315 = vld [vmem:[#allocation6 + $0x250] sm:$0xff]
      %v316 = vld [vmem:[#allocation6 + $0x258] sm:$0xff]
      %v317 = vld [vmem:[#allocation6 + $0x260] sm:$0xff]
      %v318 = vld [vmem:[#allocation6 + $0x268] sm:$0xff]
      %v319 = vld [vmem:[#allocation6 + $0x270] sm:$0xff]
      %v320 = vld [vmem:[#allocation6 + $0x278] sm:$0xff]
      %v321 = vld [vmem:[#allocation6 + $0x280] sm:$0xff]
      %v322 = vld [vmem:[#allocation6 + $0x288] sm:$0xff]
      %v323 = vld [vmem:[#allocation6 + $0x290] sm:$0xff]
      %v324 = vld [vmem:[#allocation6 + $0x298] sm:$0xff]
      %v325 = vld [vmem:[#allocation6 + $0x2a0] sm:$0xff]
      %v326 = vld [vmem:[#allocation6 + $0x2a8] sm:$0xff]
      %v327 = vld [vmem:[#allocation6 + $0x2b0] sm:$0xff]
      %v328 = vld [vmem:[#allocation6 + $0x2b8] sm:$0xff]
      %v329 = vld [vmem:[#allocation6 + $0x2c0] sm:$0xff]
      %v330 = vld [vmem:[#allocation6 + $0x2c8] sm:$0xff]
      %v331 = vld [vmem:[#allocation6 + $0x2d0] sm:$0xff]
      %v332 = vld [vmem:[#allocation6 + $0x2d8] sm:$0xff]
      %v333 = vld [vmem:[#allocation6 + $0x2e0] sm:$0xff]
      %v334 = vld [vmem:[#allocation6 + $0x2e8] sm:$0xff]
      %v335 = vld [vmem:[#allocation6 + $0x2f0] sm:$0xff]
      %v336 = vld [vmem:[#allocation6 + $0x2f8] sm:$0xff]
      %v337 = vld [vmem:[#allocation6 + $0x300] sm:$0xff]
      %v338 = vld [vmem:[#allocation6 + $0x308] sm:$0xff]
      %v339 = vld [vmem:[#allocation6 + $0x310] sm:$0xff]
      %v340 = vld [vmem:[#allocation6 + $0x318] sm:$0xff]
      %v341 = vld [vmem:[#allocation6 + $0x320] sm:$0xff]
      %v342 = vld [vmem:[#allocation6 + $0x328] sm:$0xff]
      %v343 = vld [vmem:[#allocation6 + $0x330] sm:$0xff]
      %v344 = vld [vmem:[#allocation6 + $0x338] sm:$0xff]
      %v345 = vld [vmem:[#allocation6 + $0x340] sm:$0xff]
      %v346 = vld [vmem:[#allocation6 + $0x348] sm:$0xff]
      %v347 = vld [vmem:[#allocation6 + $0x350] sm:$0xff]
      %v348 = vld [vmem:[#allocation6 + $0x358] sm:$0xff]
      %v349 = vld [vmem:[#allocation6 + $0x360] sm:$0xff]
      %v350 = vld [vmem:[#allocation6 + $0x368] sm:$0xff]
      %v351 = vld [vmem:[#allocation6 + $0x370] sm:$0xff]
      %v352 = vld [vmem:[#allocation6 + $0x378] sm:$0xff]
      %v353 = vld [vmem:[#allocation6 + $0x380] sm:$0xff]
      %v354 = vld [vmem:[#allocation6 + $0x388] sm:$0xff]
      %v355 = vld [vmem:[#allocation6 + $0x390] sm:$0xff]
      %v356 = vld [vmem:[#allocation6 + $0x398] sm:$0xff]
      %v357 = vld [vmem:[#allocation6 + $0x3a0] sm:$0xff]
      %v358 = vld [vmem:[#allocation6 + $0x3a8] sm:$0xff]
      %v359 = vld [vmem:[#allocation6 + $0x3b0] sm:$0xff]
      %v360 = vld [vmem:[#allocation6 + $0x3b8] sm:$0xff]
      %v361 = vld [vmem:[#allocation6 + $0x3c0] sm:$0xff]
      %v362 = vld [vmem:[#allocation6 + $0x3c8] sm:$0xff]
      %v363 = vld [vmem:[#allocation6 + $0x3d0] sm:$0xff]
      %v364 = vld [vmem:[#allocation6 + $0x3d8] sm:$0xff]
      %v365 = vld [vmem:[#allocation6 + $0x3e0] sm:$0xff]
      %v366 = vld [vmem:[#allocation6 + $0x3e8] sm:$0xff]
      %v367 = vld [vmem:[#allocation6 + $0x3f0] sm:$0xff]
      %v368 = vld [vmem:[#allocation6 + $0x3f8] sm:$0xff]
      %v369 = vld [vmem:[#allocation6 + $0x400] sm:$0xff]
      %v370 = vld [vmem:[#allocation6 + $0x408] sm:$0xff]
      %v371 = vld [vmem:[#allocation6 + $0x410] sm:$0xff]
      %v372 = vld [vmem:[#allocation6 + $0x418] sm:$0xff]
      %v373 = vld [vmem:[#allocation6 + $0x420] sm:$0xff]
      %v374 = vld [vmem:[#allocation6 + $0x428] sm:$0xff]
      %v375 = vld [vmem:[#allocation6 + $0x430] sm:$0xff]
      %v376 = vld [vmem:[#allocation6 + $0x438] sm:$0xff]
      %v377 = vld [vmem:[#allocation6 + $0x440] sm:$0xff]
      %v378 = vld [vmem:[#allocation6 + $0x448] sm:$0xff]
      %v379 = vld [vmem:[#allocation6 + $0x450] sm:$0xff]
      %v380 = vld [vmem:[#allocation6 + $0x458] sm:$0xff]
      %v381 = vld [vmem:[#allocation6 + $0x460] sm:$0xff]
      %v382 = vld [vmem:[#allocation6 + $0x468] sm:$0xff]
      %v383 = vld [vmem:[#allocation6 + $0x470] sm:$0xff]
      %v384 = vld [vmem:[#allocation6 + $0x478] sm:$0xff]
      %v385 = vld [vmem:[#allocation6 + $0x480] sm:$0xff]
      %v386 = vld [vmem:[#allocation6 + $0x488] sm:$0xff]
      %v387 = vld [vmem:[#allocation6 + $0x490] sm:$0xff]
      %v388 = vld [vmem:[#allocation6 + $0x498] sm:$0xff]
      %v389 = vld [vmem:[#allocation6 + $0x4a0] sm:$0xff]
      %v390 = vld [vmem:[#allocation6 + $0x4a8] sm:$0xff]
      %v391 = vld [vmem:[#allocation6 + $0x4b0] sm:$0xff]
      %v392 = vld [vmem:[#allocation6 + $0x4b8] sm:$0xff]
      %v393 = vld [vmem:[#allocation6 + $0x4c0] sm:$0xff]
      %v394 = vld [vmem:[#allocation6 + $0x4c8] sm:$0xff]
      %v395 = vld [vmem:[#allocation6 + $0x4d0] sm:$0xff]
      %v396 = vld [vmem:[#allocation6 + $0x4d8] sm:$0xff]
      %v397 = vld [vmem:[#allocation6 + $0x4e0] sm:$0xff]
      %v398 = vld [vmem:[#allocation6 + $0x4e8] sm:$0xff]
      %v399 = vld [vmem:[#allocation6 + $0x4f0] sm:$0xff]
      %v400 = vld [vmem:[#allocation6 + $0x4f8] sm:$0xff]
      %v401 = vld [vmem:[#allocation6 + $0x500] sm:$0xff]
      %v402 = vld [vmem:[#allocation6 + $0x508] sm:$0xff]
      %v403 = vld [vmem:[#allocation6 + $0x510] sm:$0xff]
      %v404 = vld [vmem:[#allocation6 + $0x518] sm:$0xff]
      %v405 = vld [vmem:[#allocation6 + $0x520] sm:$0xff]
      %v406 = vld [vmem:[#allocation6 + $0x528] sm:$0xff]
      %v407 = vld [vmem:[#allocation6 + $0x530] sm:$0xff]
      %v408 = vld [vmem:[#allocation6 + $0x538] sm:$0xff]
      %v409 = vld [vmem:[#allocation6 + $0x540] sm:$0xff]
      %v410 = vld [vmem:[#allocation6 + $0x548] sm:$0xff]
      %v411 = vld [vmem:[#allocation6 + $0x550] sm:$0xff]
      %v412 = vld [vmem:[#allocation6 + $0x558] sm:$0xff]
      %v413 = vld [vmem:[#allocation6 + $0x560] sm:$0xff]
      %v414 = vld [vmem:[#allocation6 + $0x568] sm:$0xff]
      %v415 = vld [vmem:[#allocation6 + $0x570] sm:$0xff]
      %v416 = vld [vmem:[#allocation6 + $0x578] sm:$0xff]
      %v417 = vld [vmem:[#allocation6 + $0x580] sm:$0xff]
      %v418 = vld [vmem:[#allocation6 + $0x588] sm:$0xff]
      %v419 = vld [vmem:[#allocation6 + $0x590] sm:$0xff]
      %v420 = vld [vmem:[#allocation6 + $0x598] sm:$0xff]
      %v421 = vld [vmem:[#allocation6 + $0x5a0] sm:$0xff]
      %v422 = vld [vmem:[#allocation6 + $0x5a8] sm:$0xff]
      %v423 = vld [vmem:[#allocation6 + $0x5b0] sm:$0xff]
      %v424 = vld [vmem:[#allocation6 + $0x5b8] sm:$0xff]
      %v425 = vld [vmem:[#allocation6 + $0x5c0] sm:$0xff]
      %v426 = vld [vmem:[#allocation6 + $0x5c8] sm:$0xff]
      %v427 = vld [vmem:[#allocation6 + $0x5d0] sm:$0xff]
      %v428 = vld [vmem:[#allocation6 + $0x5d8] sm:$0xff]
      %v429 = vld [vmem:[#allocation6 + $0x5e0] sm:$0xff]
      %v430 = vld [vmem:[#allocation6 + $0x5e8] sm:$0xff]
      %v431 = vld [vmem:[#allocation6 + $0x5f0] sm:$0xff]
      %v432 = vld [vmem:[#allocation6 + $0x5f8] sm:$0xff]
      %v433 = vld [vmem:[#allocation6 + $0x600] sm:$0xff]
      %v434 = vld [vmem:[#allocation6 + $0x608] sm:$0xff]
      %v435 = vld [vmem:[#allocation6 + $0x610] sm:$0xff]
      %v436 = vld [vmem:[#allocation6 + $0x618] sm:$0xff]
      %v437 = vld [vmem:[#allocation6 + $0x620] sm:$0xff]
      %v438 = vld [vmem:[#allocation6 + $0x628] sm:$0xff]
      %v439 = vld [vmem:[#allocation6 + $0x630] sm:$0xff]
      %v440 = vld [vmem:[#allocation6 + $0x638] sm:$0xff]
      %v441 = vld [vmem:[#allocation6 + $0x640] sm:$0xff]
      %v442 = vld [vmem:[#allocation6 + $0x648] sm:$0xff]
      %v443 = vld [vmem:[#allocation6 + $0x650] sm:$0xff]
      %v444 = vld [vmem:[#allocation6 + $0x658] sm:$0xff]
      %v445 = vld [vmem:[#allocation6 + $0x660] sm:$0xff]
      %v446 = vld [vmem:[#allocation6 + $0x668] sm:$0xff]
      %v447 = vld [vmem:[#allocation6 + $0x670] sm:$0xff]
      %v448 = vld [vmem:[#allocation6 + $0x678] sm:$0xff]
      %v449 = vld [vmem:[#allocation6 + $0x680] sm:$0xff]
      %v450 = vld [vmem:[#allocation6 + $0x688] sm:$0xff]
      %v451 = vld [vmem:[#allocation6 + $0x690] sm:$0xff]
      %v452 = vld [vmem:[#allocation6 + $0x698] sm:$0xff]
      %v453 = vld [vmem:[#allocation6 + $0x6a0] sm:$0xff]
      %v454 = vld [vmem:[#allocation6 + $0x6a8] sm:$0xff]
      %v455 = vld [vmem:[#allocation6 + $0x6b0] sm:$0xff]
      %v456 = vld [vmem:[#allocation6 + $0x6b8] sm:$0xff]
      %v457 = vld [vmem:[#allocation6 + $0x6c0] sm:$0xff]
      %v458 = vld [vmem:[#allocation6 + $0x6c8] sm:$0xff]
      %v459 = vld [vmem:[#allocation6 + $0x6d0] sm:$0xff]
      %v460 = vld [vmem:[#allocation6 + $0x6d8] sm:$0xff]
      %v461 = vld [vmem:[#allocation6 + $0x6e0] sm:$0xff]
      %v462 = vld [vmem:[#allocation6 + $0x6e8] sm:$0xff]
      %v463 = vld [vmem:[#allocation6 + $0x6f0] sm:$0xff]
      %v464 = vld [vmem:[#allocation6 + $0x6f8] sm:$0xff]
      %v465 = vld [vmem:[#allocation6 + $0x700] sm:$0xff]
      %v466 = vld [vmem:[#allocation6 + $0x708] sm:$0xff]
      %v467 = vld [vmem:[#allocation6 + $0x710] sm:$0xff]
      %v468 = vld [vmem:[#allocation6 + $0x718] sm:$0xff]
      %v469 = vld [vmem:[#allocation6 + $0x720] sm:$0xff]
      %v470 = vld [vmem:[#allocation6 + $0x728] sm:$0xff]
      %v471 = vld [vmem:[#allocation6 + $0x730] sm:$0xff]
      %v472 = vld [vmem:[#allocation6 + $0x738] sm:$0xff]
      %v473 = vld [vmem:[#allocation6 + $0x740] sm:$0xff]
      %v474 = vld [vmem:[#allocation6 + $0x748] sm:$0xff]
      %v475 = vld [vmem:[#allocation6 + $0x750] sm:$0xff]
      %v476 = vld [vmem:[#allocation6 + $0x758] sm:$0xff]
      %v477 = vld [vmem:[#allocation6 + $0x760] sm:$0xff]
      %v478 = vld [vmem:[#allocation6 + $0x768] sm:$0xff]
      %v479 = vld [vmem:[#allocation6 + $0x770] sm:$0xff]
      %v480 = vld [vmem:[#allocation6 + $0x778] sm:$0xff]
      %v481 = vld [vmem:[#allocation6 + $0x780] sm:$0xff]
      %v482 = vld [vmem:[#allocation6 + $0x788] sm:$0xff]
      %v483 = vld [vmem:[#allocation6 + $0x790] sm:$0xff]
      %v484 = vld [vmem:[#allocation6 + $0x798] sm:$0xff]
      %v485 = vld [vmem:[#allocation6 + $0x7a0] sm:$0xff]
      %v486 = vld [vmem:[#allocation6 + $0x7a8] sm:$0xff]
      %v487 = vld [vmem:[#allocation6 + $0x7b0] sm:$0xff]
      %v488 = vld [vmem:[#allocation6 + $0x7b8] sm:$0xff]
      %v489 = vld [vmem:[#allocation6 + $0x7c0] sm:$0xff]
      %v490 = vld [vmem:[#allocation6 + $0x7c8] sm:$0xff]
      %v491 = vld [vmem:[#allocation6 + $0x7d0] sm:$0xff]
      %v492 = vld [vmem:[#allocation6 + $0x7d8] sm:$0xff]
      %v493 = vld [vmem:[#allocation6 + $0x7e0] sm:$0xff]
      %v494 = vld [vmem:[#allocation6 + $0x7e8] sm:$0xff]
      %v495 = vld [vmem:[#allocation6 + $0x7f0] sm:$0xff]
      %v496 = vld [vmem:[#allocation6 + $0x7f8] sm:$0xff]
      %v497 = vld [vmem:[#allocation6 + $0x800] sm:$0xff]
      %v498 = vld [vmem:[#allocation6 + $0x808] sm:$0xff]
      %v499 = vld [vmem:[#allocation6 + $0x810] sm:$0xff]
      %v500 = vld [vmem:[#allocation6 + $0x818] sm:$0xff]
      %v501 = vld [vmem:[#allocation6 + $0x820] sm:$0xff]
      %v502 = vld [vmem:[#allocation6 + $0x828] sm:$0xff]
      %v503 = vld [vmem:[#allocation6 + $0x830] sm:$0xff]
      %v504 = vld [vmem:[#allocation6 + $0x838] sm:$0xff]
      %v505 = vld [vmem:[#allocation6 + $0x840] sm:$0xff]
      %v506 = vld [vmem:[#allocation6 + $0x848] sm:$0xff]
      %v507 = vld [vmem:[#allocation6 + $0x850] sm:$0xff]
      %v508 = vld [vmem:[#allocation6 + $0x858] sm:$0xff]
      %v509 = vld [vmem:[#allocation6 + $0x860] sm:$0xff]
      %v510 = vld [vmem:[#allocation6 + $0x868] sm:$0xff]
      %v511 = vld [vmem:[#allocation6 + $0x870] sm:$0xff]
      %v512 = vld [vmem:[#allocation6 + $0x878] sm:$0xff]
      %v513 = vld [vmem:[#allocation6 + $0x880] sm:$0xff]
      %v514 = vld [vmem:[#allocation6 + $0x888] sm:$0xff]
      %v515 = vld [vmem:[#allocation6 + $0x890] sm:$0xff]
      %v516 = vld [vmem:[#allocation6 + $0x898] sm:$0xff]
      %v517 = vld [vmem:[#allocation6 + $0x8a0] sm:$0xff]
      %v518 = vld [vmem:[#allocation6 + $0x8a8] sm:$0xff]
      %v519 = vld [vmem:[#allocation6 + $0x8b0] sm:$0xff]
      %v520 = vld [vmem:[#allocation6 + $0x8b8] sm:$0xff]
      %v521 = vld [vmem:[#allocation6 + $0x8c0] sm:$0xff]
      %v522 = vld [vmem:[#allocation6 + $0x8c8] sm:$0xff]
      %v523 = vld [vmem:[#allocation6 + $0x8d0] sm:$0xff]
      %v524 = vld [vmem:[#allocation6 + $0x8d8] sm:$0xff]
      %v525 = vld [vmem:[#allocation6 + $0x8e0] sm:$0xff]
      %v526 = vld [vmem:[#allocation6 + $0x8e8] sm:$0xff]
      %v527 = vld [vmem:[#allocation6 + $0x8f0] sm:$0xff]
      %v528 = vld [vmem:[#allocation6 + $0x8f8] sm:$0xff]
      %v529 = vld [vmem:[#allocation6 + $0x900] sm:$0xff]
      %v530 = vld [vmem:[#allocation6 + $0x908] sm:$0xff]
      %v531 = vld [vmem:[#allocation6 + $0x910] sm:$0xff]
      %v532 = vld [vmem:[#allocation6 + $0x918] sm:$0xff]
      %v533 = vld [vmem:[#allocation6 + $0x920] sm:$0xff]
      %v534 = vld [vmem:[#allocation6 + $0x928] sm:$0xff]
      %v535 = vld [vmem:[#allocation6 + $0x930] sm:$0xff]
      %v536 = vld [vmem:[#allocation6 + $0x938] sm:$0xff]
      %v537 = vld [vmem:[#allocation6 + $0x940] sm:$0xff]
      %v538 = vld [vmem:[#allocation6 + $0x948] sm:$0xff]
      %v539 = vld [vmem:[#allocation6 + $0x950] sm:$0xff]
      %v540 = vld [vmem:[#allocation6 + $0x958] sm:$0xff]
      %v541 = vld [vmem:[#allocation6 + $0x960] sm:$0xff]
      %v542 = vld [vmem:[#allocation6 + $0x968] sm:$0xff]
      %v543 = vld [vmem:[#allocation6 + $0x970] sm:$0xff]
      %v544 = vld [vmem:[#allocation6 + $0x978] sm:$0xff]
      %v545 = vld [vmem:[#allocation6 + $0x980] sm:$0xff]
      %v546 = vld [vmem:[#allocation6 + $0x988] sm:$0xff]
      %v547 = vld [vmem:[#allocation6 + $0x990] sm:$0xff]
      %v548 = vld [vmem:[#allocation6 + $0x998] sm:$0xff]
      %v549 = vld [vmem:[#allocation6 + $0x9a0] sm:$0xff]
      %v550 = vld [vmem:[#allocation6 + $0x9a8] sm:$0xff]
      %v551 = vld [vmem:[#allocation6 + $0x9b0] sm:$0xff]
      %v552 = vld [vmem:[#allocation6 + $0x9b8] sm:$0xff]
      %v553 = vld [vmem:[#allocation6 + $0x9c0] sm:$0xff]
      %v554 = vld [vmem:[#allocation6 + $0x9c8] sm:$0xff]
      %v555 = vld [vmem:[#allocation6 + $0x9d0] sm:$0xff]
      %v556 = vld [vmem:[#allocation6 + $0x9d8] sm:$0xff]
      %v557 = vld [vmem:[#allocation6 + $0x9e0] sm:$0xff]
      %v558 = vld [vmem:[#allocation6 + $0x9e8] sm:$0xff]
      %v559 = vld [vmem:[#allocation6 + $0x9f0] sm:$0xff]
      %v560 = vld [vmem:[#allocation6 + $0x9f8] sm:$0xff]
      %v561 = vld [vmem:[#allocation6 + $0xa00] sm:$0xff]
      %v562 = vld [vmem:[#allocation6 + $0xa08] sm:$0xff]
      %v563 = vld [vmem:[#allocation6 + $0xa10] sm:$0xff]
      %v564 = vld [vmem:[#allocation6 + $0xa18] sm:$0xff]
      %v565 = vld [vmem:[#allocation6 + $0xa20] sm:$0xff]
      %v566 = vld [vmem:[#allocation6 + $0xa28] sm:$0xff]
      %v567 = vld [vmem:[#allocation6 + $0xa30] sm:$0xff]
      %v568 = vld [vmem:[#allocation6 + $0xa38] sm:$0xff]
      %v569 = vld [vmem:[#allocation6 + $0xa40] sm:$0xff]
      %v570 = vld [vmem:[#allocation6 + $0xa48] sm:$0xff]
      %v571 = vld [vmem:[#allocation6 + $0xa50] sm:$0xff]
      %v572 = vld [vmem:[#allocation6 + $0xa58] sm:$0xff]
      %v573 = vld [vmem:[#allocation6 + $0xa60] sm:$0xff]
      %v574 = vld [vmem:[#allocation6 + $0xa68] sm:$0xff]
      %v575 = vld [vmem:[#allocation6 + $0xa70] sm:$0xff]
      %v576 = vld [vmem:[#allocation6 + $0xa78] sm:$0xff]
      %v577 = vld [vmem:[#allocation6 + $0xa80] sm:$0xff]
      %v578 = vld [vmem:[#allocation6 + $0xa88] sm:$0xff]
      %v579 = vld [vmem:[#allocation6 + $0xa90] sm:$0xff]
      %v580 = vld [vmem:[#allocation6 + $0xa98] sm:$0xff]
      %v581 = vld [vmem:[#allocation6 + $0xaa0] sm:$0xff]
      %v582 = vld [vmem:[#allocation6 + $0xaa8] sm:$0xff]
      %v583 = vld [vmem:[#allocation6 + $0xab0] sm:$0xff]
      %v584 = vld [vmem:[#allocation6 + $0xab8] sm:$0xff]
      %v585 = vld [vmem:[#allocation6 + $0xac0] sm:$0xff]
      %v586 = vld [vmem:[#allocation6 + $0xac8] sm:$0xff]
      %v587 = vld [vmem:[#allocation6 + $0xad0] sm:$0xff]
      %v588 = vld [vmem:[#allocation6 + $0xad8] sm:$0xff]
      %v589 = vld [vmem:[#allocation6 + $0xae0] sm:$0xff]
      %v590 = vld [vmem:[#allocation6 + $0xae8] sm:$0xff]
      %v591 = vld [vmem:[#allocation6 + $0xaf0] sm:$0xff]
      %v592 = vld [vmem:[#allocation6 + $0xaf8] sm:$0xff]
      %v593 = vld [vmem:[#allocation6 + $0xb00] sm:$0xff]
      %v594 = vld [vmem:[#allocation6 + $0xb08] sm:$0xff]
      %v595 = vld [vmem:[#allocation6 + $0xb10] sm:$0xff]
      %v596 = vld [vmem:[#allocation6 + $0xb18] sm:$0xff]
      %v597 = vld [vmem:[#allocation6 + $0xb20] sm:$0xff]
      %v598 = vld [vmem:[#allocation6 + $0xb28] sm:$0xff]
      %v599 = vld [vmem:[#allocation6 + $0xb30] sm:$0xff]
      %v600 = vld [vmem:[#allocation6 + $0xb38] sm:$0xff]
      %v601 = vld [vmem:[#allocation6 + $0xb40] sm:$0xff]
      %v602 = vld [vmem:[#allocation6 + $0xb48] sm:$0xff]
      %v603 = vld [vmem:[#allocation6 + $0xb50] sm:$0xff]
      %v604 = vld [vmem:[#allocation6 + $0xb58] sm:$0xff]
      %v605 = vld [vmem:[#allocation6 + $0xb60] sm:$0xff]
      %v606 = vld [vmem:[#allocation6 + $0xb68] sm:$0xff]
      %v607 = vld [vmem:[#allocation6 + $0xb70] sm:$0xff]
      %v608 = vld [vmem:[#allocation6 + $0xb78] sm:$0xff]
      %v609 = vld [vmem:[#allocation6 + $0xb80] sm:$0xff]
      %v610 = vld [vmem:[#allocation6 + $0xb88] sm:$0xff]
      %v611 = vld [vmem:[#allocation6 + $0xb90] sm:$0xff]
      %v612 = vld [vmem:[#allocation6 + $0xb98] sm:$0xff]
      %v613 = vld [vmem:[#allocation6 + $0xba0] sm:$0xff]
      %v614 = vld [vmem:[#allocation6 + $0xba8] sm:$0xff]
      %v615 = vld [vmem:[#allocation6 + $0xbb0] sm:$0xff]
      %v616 = vld [vmem:[#allocation6 + $0xbb8] sm:$0xff]
      %v617 = vld [vmem:[#allocation6 + $0xbc0] sm:$0xff]
      %v618 = vld [vmem:[#allocation6 + $0xbc8] sm:$0xff]
      %v619 = vld [vmem:[#allocation6 + $0xbd0] sm:$0xff]
      %v620 = vld [vmem:[#allocation6 + $0xbd8] sm:$0xff]
      %v621 = vld [vmem:[#allocation6 + $0xbe0] sm:$0xff]
      %v622 = vld [vmem:[#allocation6 + $0xbe8] sm:$0xff]
      %v623 = vld [vmem:[#allocation6 + $0xbf0] sm:$0xff]
      %v624 = vld [vmem:[#allocation6 + $0xbf8] sm:$0xff]
      %v625 = vld [vmem:[#allocation8] sm:$0xf]
      %v627 = vlaneseq
      %v628 = vshrl.u32 %v627, 7
      %v629 = vsub.s32 0, %v628
      %v630 = vrot.slane %v625, %v629
      %v631 = vlaneseq
      %v632 = vshrl.u32 %v631, 7
      %v633 = vsub.s32 1, %v632
      %v634 = vrot.slane %v625, %v633
      %v635 = vlaneseq
      %v636 = vshrl.u32 %v635, 7
      %v637 = vsub.s32 2, %v636
      %v638 = vrot.slane %v625, %v637
      %v639 = vlaneseq
      %v640 = vshrl.u32 %v639, 7
      %v641 = vsub.s32 3, %v640
      %v642 = vrot.slane %v625, %v641
      %v649 = vcombine.high %v239, %v239
      %v651 = vunpack.c.l.s4 1983009808
      %v652 = vunpack.c.0.s8 %v651
      %v653 = vlaneseq
      %v654 = vshrl.u32 %v653, 7
      %v655 = vsub.s32 %v652, %v654
      %v656 = vrot.slane %v239, %v655
      %v658 = vunpack.c.l.s4 1983009808
      %v659 = vunpack.c.0.s8 %v658
      %v660 = vlaneseq
      %v661 = vshrl.u32 %v660, 7
      %v662 = vsub.s32 %v659, %v661
      %v663 = vrot.slane %v649, %v662
      %v664 = vcombine.high %v656, %v656
      %v665 = vcombine.high %v663, %v663
      %v667 = vunpack.c.l.s4 1983009808
      %v668 = vunpack.c.0.s8 %v667
      %v669 = vlaneseq
      %v670 = vshrl.u32 %v669, 7
      %v671 = vsub.s32 %v668, %v670
      %v672 = vrot.slane %v240, %v671
      %v673 = vcombine.high %v672, %v672
      %680 = vmatprep.subr.mxu0 %v302
      %681 = vmatpush1.msra.mxu0 %v301
      %682 = vmatprep.subr.mxu0 %v298
      %683 = vmatpush1.msra.mxu0 %v297
      %684 = vmatprep.subr.mxu0 %v294
      %685 = vmatpush1.msra.mxu0 %v293
      %686 = vmatprep.subr.mxu0 %v290
      %687 = vmatpush1.msra.mxu0 %v289
      %688 = vmatprep.subr.mxu0 %v286
      %689 = vmatpush1.msra.mxu0 %v285
      %690 = vmatprep.subr.mxu0 %v282
      %691 = vmatpush1.msra.mxu0 %v281
      %692 = vmatprep.subr.mxu0 %v278
      %693 = vmatpush1.msra.mxu0 %v277
      %694 = vmatprep.subr.mxu0 %v274
      %695 = vmatpush1.msra.mxu0 %v273
      %696 = vmatprep.subr.mxu0 %v270
      %697 = vmatpush1.msra.mxu0 %v269
      %698 = vmatprep.subr.mxu0 %v266
      %699 = vmatpush1.msra.mxu0 %v265
      %700 = vmatprep.subr.mxu0 %v262
      %701 = vmatpush1.msra.mxu0 %v261
      %702 = vmatprep.subr.mxu0 %v258
      %703 = vmatpush1.msra.mxu0 %v257
      %704 = vmatprep.subr.mxu0 %v254
      %705 = vmatpush1.msra.mxu0 %v253
      %706 = vmatprep.subr.mxu0 %v250
      %707 = vmatpush1.msra.mxu0 %v249
      %708 = vmatprep.subr.mxu0 %v246
      %709 = vmatpush1.msra.mxu0 %v245
      %710 = vmatprep.subr.mxu0 %v242
      %711 = vmatpush1.msra.mxu0 %v241
      %712 = vmatprep.subr.mxu0 %v366
      %713 = vmatpush2.msra.mxu0 %v365
      %714 = vmatprep.subr.mxu0 %v362
      %715 = vmatpush2.msra.mxu0 %v361
      %716 = vmatprep.subr.mxu0 %v358
      %717 = vmatpush2.msra.mxu0 %v357
      %718 = vmatprep.subr.mxu0 %v354
      %719 = vmatpush2.msra.mxu0 %v353
      %720 = vmatprep.subr.mxu0 %v350
      %721 = vmatpush2.msra.mxu0 %v349
      %722 = vmatprep.subr.mxu0 %v346
      %723 = vmatpush2.msra.mxu0 %v345
      %724 = vmatprep.subr.mxu0 %v342
      %725 = vmatpush2.msra.mxu0 %v341
      %726 = vmatprep.subr.mxu0 %v338
      %727 = vmatpush2.msra.mxu0 %v337
      %728 = vmatprep.subr.mxu0 %v334
      %729 = vmatpush2.msra.mxu0 %v333
      %730 = vmatprep.subr.mxu0 %v330
      %731 = vmatpush2.msra.mxu0 %v329
      %732 = vmatprep.subr.mxu0 %v326
      %733 = vmatpush2.msra.mxu0 %v325
      %734 = vmatprep.subr.mxu0 %v322
      %735 = vmatpush2.msra.mxu0 %v321
      %736 = vmatprep.subr.mxu0 %v318
      %737 = vmatpush2.msra.mxu0 %v317
      %738 = vmatprep.subr.mxu0 %v314
      %739 = vmatpush2.msra.mxu0 %v313
      %740 = vmatprep.subr.mxu0 %v310
      %741 = vmatpush2.msra.mxu0 %v309
      %742 = vmatprep.subr.mxu0 %v306
      %743 = vmatpush2.msra.mxu0 %v305
      %744 = vmatprep.mubr.f32.mxu0 %v664
      %745 = vmatmul.mubr.f32.gmra.mxu0 %v656
      %v746 = vpop.f32.mrf.mxu0
      %v747 = vadd.f32 %v630, %v746
      %v748 = vpop.f32.mrf.mxu0
      %v749 = vadd.f32 %v634, %v748
      %750 = vdwg.mxu0
      %751 = vmatprep.subr.mxu0 %v430
      %752 = vmatpush1.msra.mxu0 %v429
      %753 = vmatprep.subr.mxu0 %v426
      %754 = vmatpush1.msra.mxu0 %v425
      %755 = vmatprep.subr.mxu0 %v422
      %756 = vmatpush1.msra.mxu0 %v421
      %757 = vmatprep.subr.mxu0 %v418
      %758 = vmatpush1.msra.mxu0 %v417
      %759 = vmatprep.subr.mxu0 %v414
      %760 = vmatpush1.msra.mxu0 %v413
      %761 = vmatprep.subr.mxu0 %v410
      %762 = vmatpush1.msra.mxu0 %v409
      %763 = vmatprep.subr.mxu0 %v406
      %764 = vmatpush1.msra.mxu0 %v405
      %765 = vmatprep.subr.mxu0 %v402
      %766 = vmatpush1.msra.mxu0 %v401
      %767 = vmatprep.subr.mxu0 %v398
      %768 = vmatpush1.msra.mxu0 %v397
      %769 = vmatprep.subr.mxu0 %v394
      %770 = vmatpush1.msra.mxu0 %v393
      %771 = vmatprep.subr.mxu0 %v390
      %772 = vmatpush1.msra.mxu0 %v389
      %773 = vmatprep.subr.mxu0 %v386
      %774 = vmatpush1.msra.mxu0 %v385
      %775 = vmatprep.subr.mxu0 %v382
      %776 = vmatpush1.msra.mxu0 %v381
      %777 = vmatprep.subr.mxu0 %v378
      %778 = vmatpush1.msra.mxu0 %v377
      %779 = vmatprep.subr.mxu0 %v374
      %780 = vmatpush1.msra.mxu0 %v373
      %781 = vmatprep.subr.mxu0 %v370
      %782 = vmatpush1.msra.mxu0 %v369
      %783 = vmatprep.subr.mxu0 %v494
      %784 = vmatpush2.msra.mxu0 %v493
      %785 = vmatprep.subr.mxu0 %v490
      %786 = vmatpush2.msra.mxu0 %v489
      %787 = vmatprep.subr.mxu0 %v486
      %788 = vmatpush2.msra.mxu0 %v485
      %789 = vmatprep.subr.mxu0 %v482
      %790 = vmatpush2.msra.mxu0 %v481
      %791 = vmatprep.subr.mxu0 %v478
      %792 = vmatpush2.msra.mxu0 %v477
      %793 = vmatprep.subr.mxu0 %v474
      %794 = vmatpush2.msra.mxu0 %v473
      %795 = vmatprep.subr.mxu0 %v470
      %796 = vmatpush2.msra.mxu0 %v469
      %797 = vmatprep.subr.mxu0 %v466
      %798 = vmatpush2.msra.mxu0 %v465
      %799 = vmatprep.subr.mxu0 %v462
      %800 = vmatpush2.msra.mxu0 %v461
      %801 = vmatprep.subr.mxu0 %v458
      %802 = vmatpush2.msra.mxu0 %v457
      %803 = vmatprep.subr.mxu0 %v454
      %804 = vmatpush2.msra.mxu0 %v453
      %805 = vmatprep.subr.mxu0 %v450
      %806 = vmatpush2.msra.mxu0 %v449
      %807 = vmatprep.subr.mxu0 %v446
      %808 = vmatpush2.msra.mxu0 %v445
      %809 = vmatprep.subr.mxu0 %v442
      %810 = vmatpush2.msra.mxu0 %v441
      %811 = vmatprep.subr.mxu0 %v438
      %812 = vmatpush2.msra.mxu0 %v437
      %813 = vmatprep.subr.mxu0 %v434
      %814 = vmatpush2.msra.mxu0 %v433
      %815 = vmatprep.mubr.f32.mxu0 %v665
      %816 = vmatmul.mubr.f32.gmra.mxu0 %v663
      %v817 = vpop.f32.mrf.mxu0
      %v818 = vadd.f32 %v747, %v817
      %v819 = vpop.f32.mrf.mxu0
      %v820 = vadd.f32 %v749, %v819
      %821 = vdwg.mxu0
      %822 = vmatprep.subr.mxu0 %v558
      %823 = vmatpush1.msra.mxu0 %v557
      %824 = vmatprep.subr.mxu0 %v554
      %825 = vmatpush1.msra.mxu0 %v553
      %826 = vmatprep.subr.mxu0 %v550
      %827 = vmatpush1.msra.mxu0 %v549
      %828 = vmatprep.subr.mxu0 %v546
      %829 = vmatpush1.msra.mxu0 %v545
      %830 = vmatprep.subr.mxu0 %v542
      %831 = vmatpush1.msra.mxu0 %v541
      %832 = vmatprep.subr.mxu0 %v538
      %833 = vmatpush1.msra.mxu0 %v537
      %834 = vmatprep.subr.mxu0 %v534
      %835 = vmatpush1.msra.mxu0 %v533
      %836 = vmatprep.subr.mxu0 %v530
      %837 = vmatpush1.msra.mxu0 %v529
      %838 = vmatprep.subr.mxu0 %v526
      %839 = vmatpush1.msra.mxu0 %v525
      %840 = vmatprep.subr.mxu0 %v522
      %841 = vmatpush1.msra.mxu0 %v521
      %842 = vmatprep.subr.mxu0 %v518
      %843 = vmatpush1.msra.mxu0 %v517
      %844 = vmatprep.subr.mxu0 %v514
      %845 = vmatpush1.msra.mxu0 %v513
      %846 = vmatprep.subr.mxu0 %v510
      %847 = vmatpush1.msra.mxu0 %v509
      %848 = vmatprep.subr.mxu0 %v506
      %849 = vmatpush1.msra.mxu0 %v505
      %850 = vmatprep.subr.mxu0 %v502
      %851 = vmatpush1.msra.mxu0 %v501
      %852 = vmatprep.subr.mxu0 %v498
      %853 = vmatpush1.msra.mxu0 %v497
      %854 = vmatprep.subr.mxu0 %v622
      %855 = vmatpush2.msra.mxu0 %v621
      %856 = vmatprep.subr.mxu0 %v618
      %857 = vmatpush2.msra.mxu0 %v617
      %858 = vmatprep.subr.mxu0 %v614
      %859 = vmatpush2.msra.mxu0 %v613
      %860 = vmatprep.subr.mxu0 %v610
      %861 = vmatpush2.msra.mxu0 %v609
      %862 = vmatprep.subr.mxu0 %v606
      %863 = vmatpush2.msra.mxu0 %v605
      %864 = vmatprep.subr.mxu0 %v602
      %865 = vmatpush2.msra.mxu0 %v601
      %866 = vmatprep.subr.mxu0 %v598
      %867 = vmatpush2.msra.mxu0 %v597
      %868 = vmatprep.subr.mxu0 %v594
      %869 = vmatpush2.msra.mxu0 %v593
      %870 = vmatprep.subr.mxu0 %v590
      %871 = vmatpush2.msra.mxu0 %v589
      %872 = vmatprep.subr.mxu0 %v586
      %873 = vmatpush2.msra.mxu0 %v585
      %874 = vmatprep.subr.mxu0 %v582
      %875 = vmatpush2.msra.mxu0 %v581
      %876 = vmatprep.subr.mxu0 %v578
      %877 = vmatpush2.msra.mxu0 %v577
      %878 = vmatprep.subr.mxu0 %v574
      %879 = vmatpush2.msra.mxu0 %v573
      %880 = vmatprep.subr.mxu0 %v570
      %881 = vmatpush2.msra.mxu0 %v569
      %882 = vmatprep.subr.mxu0 %v566
      %883 = vmatpush2.msra.mxu0 %v565
      %884 = vmatprep.subr.mxu0 %v562
      %885 = vmatpush2.msra.mxu0 %v561
      %886 = vmatprep.mubr.f32.mxu0 %v673
      %887 = vmatmul.mubr.f32.gmra.mxu0 %v672
      %v888 = vpop.f32.mrf.mxu0
      %v889 = vadd.f32 %v818, %v888
      %v890 = vpop.f32.mrf.mxu0
      %v891 = vadd.f32 %v820, %v890
      %892 = vdwg.mxu0
      %893 = vmatprep.subr.mxu0 %v304
      %894 = vmatpush1.msra.mxu0 %v303
      %895 = vmatprep.subr.mxu0 %v300
      %896 = vmatpush1.msra.mxu0 %v299
      %897 = vmatprep.subr.mxu0 %v296
      %898 = vmatpush1.msra.mxu0 %v295
      %899 = vmatprep.subr.mxu0 %v292
      %900 = vmatpush1.msra.mxu0 %v291
      %901 = vmatprep.subr.mxu0 %v288
      %902 = vmatpush1.msra.mxu0 %v287
      %903 = vmatprep.subr.mxu0 %v284
      %904 = vmatpush1.msra.mxu0 %v283
      %905 = vmatprep.subr.mxu0 %v280
      %906 = vmatpush1.msra.mxu0 %v279
      %907 = vmatprep.subr.mxu0 %v276
      %908 = vmatpush1.msra.mxu0 %v275
      %909 = vmatprep.subr.mxu0 %v272
      %910 = vmatpush1.msra.mxu0 %v271
      %911 = vmatprep.subr.mxu0 %v268
      %912 = vmatpush1.msra.mxu0 %v267
      %913 = vmatprep.subr.mxu0 %v264
      %914 = vmatpush1.msra.mxu0 %v263
      %915 = vmatprep.subr.mxu0 %v260
      %916 = vmatpush1.msra.mxu0 %v259
      %917 = vmatprep.subr.mxu0 %v256
      %918 = vmatpush1.msra.mxu0 %v255
      %919 = vmatprep.subr.mxu0 %v252
      %920 = vmatpush1.msra.mxu0 %v251
      %921 = vmatprep.subr.mxu0 %v248
      %922 = vmatpush1.msra.mxu0 %v247
      %923 = vmatprep.subr.mxu0 %v244
      %924 = vmatpush1.msra.mxu0 %v243
      %925 = vmatprep.subr.mxu0 %v368
      %926 = vmatpush2.msra.mxu0 %v367
      %927 = vmatprep.subr.mxu0 %v364
      %928 = vmatpush2.msra.mxu0 %v363
      %929 = vmatprep.subr.mxu0 %v360
      %930 = vmatpush2.msra.mxu0 %v359
      %931 = vmatprep.subr.mxu0 %v356
      %932 = vmatpush2.msra.mxu0 %v355
      %933 = vmatprep.subr.mxu0 %v352
      %934 = vmatpush2.msra.mxu0 %v351
      %935 = vmatprep.subr.mxu0 %v348
      %936 = vmatpush2.msra.mxu0 %v347
      %937 = vmatprep.subr.mxu0 %v344
      %938 = vmatpush2.msra.mxu0 %v343
      %939 = vmatprep.subr.mxu0 %v340
      %940 = vmatpush2.msra.mxu0 %v339
      %941 = vmatprep.subr.mxu0 %v336
      %942 = vmatpush2.msra.mxu0 %v335
      %943 = vmatprep.subr.mxu0 %v332
      %944 = vmatpush2.msra.mxu0 %v331
      %945 = vmatprep.subr.mxu0 %v328
      %946 = vmatpush2.msra.mxu0 %v327
      %947 = vmatprep.subr.mxu0 %v324
      %948 = vmatpush2.msra.mxu0 %v323
      %949 = vmatprep.subr.mxu0 %v320
      %950 = vmatpush2.msra.mxu0 %v319
      %951 = vmatprep.subr.mxu0 %v316
      %952 = vmatpush2.msra.mxu0 %v315
      %953 = vmatprep.subr.mxu0 %v312
      %954 = vmatpush2.msra.mxu0 %v311
      %955 = vmatprep.subr.mxu0 %v308
      %956 = vmatpush2.msra.mxu0 %v307
      %957 = vmatprep.mubr.f32.mxu0 %v664
      %958 = vmatmul.mubr.f32.gmra.mxu0 %v656
      %v959 = vpop.f32.mrf.mxu0
      %v960 = vadd.f32 %v638, %v959
      %v961 = vpop.f32.mrf.mxu0
      %v962 = vadd.f32 %v642, %v961
      %963 = vdwg.mxu0
      %964 = vmatprep.subr.mxu0 %v432
      %965 = vmatpush1.msra.mxu0 %v431
      %966 = vmatprep.subr.mxu0 %v428
      %967 = vmatpush1.msra.mxu0 %v427
      %968 = vmatprep.subr.mxu0 %v424
      %969 = vmatpush1.msra.mxu0 %v423
      %970 = vmatprep.subr.mxu0 %v420
      %971 = vmatpush1.msra.mxu0 %v419
      %972 = vmatprep.subr.mxu0 %v416
      %973 = vmatpush1.msra.mxu0 %v415
      %974 = vmatprep.subr.mxu0 %v412
      %975 = vmatpush1.msra.mxu0 %v411
      %976 = vmatprep.subr.mxu0 %v408
      %977 = vmatpush1.msra.mxu0 %v407
      %978 = vmatprep.subr.mxu0 %v404
      %979 = vmatpush1.msra.mxu0 %v403
      %980 = vmatprep.subr.mxu0 %v400
      %981 = vmatpush1.msra.mxu0 %v399
      %982 = vmatprep.subr.mxu0 %v396
      %983 = vmatpush1.msra.mxu0 %v395
      %984 = vmatprep.subr.mxu0 %v392
      %985 = vmatpush1.msra.mxu0 %v391
      %986 = vmatprep.subr.mxu0 %v388
      %987 = vmatpush1.msra.mxu0 %v387
      %988 = vmatprep.subr.mxu0 %v384
      %989 = vmatpush1.msra.mxu0 %v383
      %990 = vmatprep.subr.mxu0 %v380
      %991 = vmatpush1.msra.mxu0 %v379
      %992 = vmatprep.subr.mxu0 %v376
      %993 = vmatpush1.msra.mxu0 %v375
      %994 = vmatprep.subr.mxu0 %v372
      %995 = vmatpush1.msra.mxu0 %v371
      %996 = vmatprep.subr.mxu0 %v496
      %997 = vmatpush2.msra.mxu0 %v495
      %998 = vmatprep.subr.mxu0 %v492
      %999 = vmatpush2.msra.mxu0 %v491
      %1000 = vmatprep.subr.mxu0 %v488
      %1001 = vmatpush2.msra.mxu0 %v487
      %1002 = vmatprep.subr.mxu0 %v484
      %1003 = vmatpush2.msra.mxu0 %v483
      %1004 = vmatprep.subr.mxu0 %v480
      %1005 = vmatpush2.msra.mxu0 %v479
      %1006 = vmatprep.subr.mxu0 %v476
      %1007 = vmatpush2.msra.mxu0 %v475
      %1008 = vmatprep.subr.mxu0 %v472
      %1009 = vmatpush2.msra.mxu0 %v471
      %1010 = vmatprep.subr.mxu0 %v468
      %1011 = vmatpush2.msra.mxu0 %v467
      %1012 = vmatprep.subr.mxu0 %v464
      %1013 = vmatpush2.msra.mxu0 %v463
      %1014 = vmatprep.subr.mxu0 %v460
      %1015 = vmatpush2.msra.mxu0 %v459
      %1016 = vmatprep.subr.mxu0 %v456
      %1017 = vmatpush2.msra.mxu0 %v455
      %1018 = vmatprep.subr.mxu0 %v452
      %1019 = vmatpush2.msra.mxu0 %v451
      %1020 = vmatprep.subr.mxu0 %v448
      %1021 = vmatpush2.msra.mxu0 %v447
      %1022 = vmatprep.subr.mxu0 %v444
      %1023 = vmatpush2.msra.mxu0 %v443
      %1024 = vmatprep.subr.mxu0 %v440
      %1025 = vmatpush2.msra.mxu0 %v439
      %1026 = vmatprep.subr.mxu0 %v436
      %1027 = vmatpush2.msra.mxu0 %v435
      %1028 = vmatprep.mubr.f32.mxu0 %v665
      %1029 = vmatmul.mubr.f32.gmra.mxu0 %v663
      %v1030 = vpop.f32.mrf.mxu0
      %v1031 = vadd.f32 %v960, %v1030
      %v1032 = vpop.f32.mrf.mxu0
      %v1033 = vadd.f32 %v962, %v1032
      %1034 = vdwg.mxu0
      %1035 = vmatprep.subr.mxu0 %v560
      %1036 = vmatpush1.msra.mxu0 %v559
      %1037 = vmatprep.subr.mxu0 %v556
      %1038 = vmatpush1.msra.mxu0 %v555
      %1039 = vmatprep.subr.mxu0 %v552
      %1040 = vmatpush1.msra.mxu0 %v551
      %1041 = vmatprep.subr.mxu0 %v548
      %1042 = vmatpush1.msra.mxu0 %v547
      %1043 = vmatprep.subr.mxu0 %v544
      %1044 = vmatpush1.msra.mxu0 %v543
      %1045 = vmatprep.subr.mxu0 %v540
      %1046 = vmatpush1.msra.mxu0 %v539
      %1047 = vmatprep.subr.mxu0 %v536
      %1048 = vmatpush1.msra.mxu0 %v535
      %1049 = vmatprep.subr.mxu0 %v532
      %1050 = vmatpush1.msra.mxu0 %v531
      %1051 = vmatprep.subr.mxu0 %v528
      %1052 = vmatpush1.msra.mxu0 %v527
      %1053 = vmatprep.subr.mxu0 %v524
      %1054 = vmatpush1.msra.mxu0 %v523
      %1055 = vmatprep.subr.mxu0 %v520
      %1056 = vmatpush1.msra.mxu0 %v519
      %1057 = vmatprep.subr.mxu0 %v516
      %1058 = vmatpush1.msra.mxu0 %v515
      %1059 = vmatprep.subr.mxu0 %v512
      %1060 = vmatpush1.msra.mxu0 %v511
      %1061 = vmatprep.subr.mxu0 %v508
      %1062 = vmatpush1.msra.mxu0 %v507
      %1063 = vmatprep.subr.mxu0 %v504
      %1064 = vmatpush1.msra.mxu0 %v503
      %1065 = vmatprep.subr.mxu0 %v500
      %1066 = vmatpush1.msra.mxu0 %v499
      %1067 = vmatprep.subr.mxu0 %v624
      %1068 = vmatpush2.msra.mxu0 %v623
      %1069 = vmatprep.subr.mxu0 %v620
      %1070 = vmatpush2.msra.mxu0 %v619
      %1071 = vmatprep.subr.mxu0 %v616
      %1072 = vmatpush2.msra.mxu0 %v615
      %1073 = vmatprep.subr.mxu0 %v612
      %1074 = vmatpush2.msra.mxu0 %v611
      %1075 = vmatprep.subr.mxu0 %v608
      %1076 = vmatpush2.msra.mxu0 %v607
      %1077 = vmatprep.subr.mxu0 %v604
      %1078 = vmatpush2.msra.mxu0 %v603
      %1079 = vmatprep.subr.mxu0 %v600
      %1080 = vmatpush2.msra.mxu0 %v599
      %1081 = vmatprep.subr.mxu0 %v596
      %1082 = vmatpush2.msra.mxu0 %v595
      %1083 = vmatprep.subr.mxu0 %v592
      %1084 = vmatpush2.msra.mxu0 %v591
      %1085 = vmatprep.subr.mxu0 %v588
      %1086 = vmatpush2.msra.mxu0 %v587
      %1087 = vmatprep.subr.mxu0 %v584
      %1088 = vmatpush2.msra.mxu0 %v583
      %1089 = vmatprep.subr.mxu0 %v580
      %1090 = vmatpush2.msra.mxu0 %v579
      %1091 = vmatprep.subr.mxu0 %v576
      %1092 = vmatpush2.msra.mxu0 %v575
      %1093 = vmatprep.subr.mxu0 %v572
      %1094 = vmatpush2.msra.mxu0 %v571
      %1095 = vmatprep.subr.mxu0 %v568
      %1096 = vmatpush2.msra.mxu0 %v567
      %1097 = vmatprep.subr.mxu0 %v564
      %1098 = vmatpush2.msra.mxu0 %v563
      %1099 = vmatprep.mubr.f32.mxu0 %v673
      %1100 = vmatmul.mubr.f32.gmra.mxu0 %v672
      %v1101 = vpop.f32.mrf.mxu0
      %v1102 = vadd.f32 %v1031, %v1101
      %v1103 = vpop.f32.mrf.mxu0
      %v1104 = vadd.f32 %v1033, %v1103
      %1105 = vdwg.mxu0
      %v1110 = vcombine.low %v889, %v891
      %v1111 = vcombine.low %v1102, %v1104
      %v1113 = vunpack.c.l.s4 1983009808
      %v1114 = vunpack.c.0.s8 %v1113
      %v1115 = vlaneseq
      %v1116 = vshrl.u32 %v1115, 7
      %v1117 = vsub.s32 %v1114, %v1116
      %v1118 = vrot.slane %v1110, %v1117
      %v1120 = vunpack.c.l.s4 1983009808
      %v1121 = vunpack.c.0.s8 %v1120
      %v1122 = vlaneseq
      %v1123 = vshrl.u32 %v1122, 7
      %v1124 = vsub.s32 %v1121, %v1123
      %v1125 = vrot.slane %v1111, %v1124
      %v1126 = vcombine.low %v1118, %v1125
      %1128 = vst [vmem:[#allocation9] sm:$0xff] %v1126
    $region33: #{transformer_encoder_head.1} parent=1 // pred_fallthru
      _
    // Predicated region
    $region34: #{transformer_encoder_head.1} parent=1 // pred_check
      _
    $region35: #{transformer_encoder_head.1} parent=1 // pred_check_branch
      %1130 = sbr.rel (0) target = $region37
    $region36: #{transformer_encoder_head.1} parent=1 // pred_region
      %s1132 = ssub.s32 128, 128
      %1133 = vsyncadd [#allocation5], %s1132
      %s1135 = sshll.u32 [#allocation9], 4
      %s1136 = int_to_ptr.vmem [resolvable:$true] %s1135
      %1138 = dma.vmem_to_hbm [thread:$0]  %s1136, 128, %s3, [#allocation5]
    $region37: #{transformer_encoder_head.1} parent=1 // pred_fallthru
      _
    // Predicated region
    $region38: #{transformer_encoder_head.1} parent=1 // pred_check
      _
    $region39: #{transformer_encoder_head.1} parent=1 // pred_check_branch
      %1140 = sbr.rel (0) target = $region41
    $region40: #{transformer_encoder_head.1} parent=1 // pred_region
      %1141 = dma.done [#allocation5], 128
    $region41: #{transformer_encoder_head.1} parent=1 // pred_fallthru
      _
    %1142 = vsyncpa [#allocation4], 1
    %1143 = vsyncpa [#allocation7], 1
    %1144 = vsyncpa [#allocation5], 1

</llo_original>
